<compile_context>
chip_gen: v6e
topology: v6e:2x2x1
jax: 0.10.0
libtpu: 0.0.40
codegen_flags: <defaults>
</compile_context>

<pallas_src>
import functools

import numpy as np
import jax
import jax.numpy as jnp
from jax import lax
from jax.experimental import pallas as pl
from jax.experimental.pallas import tpu as pltpu


def _round_up(x, m):
    return ((x + m - 1) // m) * m


def _vmem_capacity_bytes():
    try:
        info = pltpu.get_tpu_info()
        cap = getattr(info, "vmem_capacity_bytes", None)
        if cap:
            return int(cap)
    except Exception:
        pass
    return 64 * 1024 * 1024  # conservative default (v7x per-core VMEM)


def _activate(y, activation, slope):
    if activation == "relu":
        return jnp.maximum(y, 0.0)
    if activation == "leaky_relu":
        return jnp.where(y >= 0.0, y, slope * y)
    if activation == "elu":
        return jnp.where(y >= 0.0, y, jnp.exp(y) - 1.0)
    return y  # activation is None / anything else -> identity


# ----------------------- fused single-pass kernel (small x) ------------------
def _bn_fused_kernel(count, eps, activation, slope, x_ref, gb_ref, o_ref):
    x = x_ref[...].astype(jnp.float32)                        # (N, C, L)
    s1 = jnp.sum(jnp.sum(x, axis=2, keepdims=True), axis=0, keepdims=True)
    s2 = jnp.sum(jnp.sum(x * x, axis=2, keepdims=True), axis=0, keepdims=True)
    inv_n = 1.0 / count
    mean = s1 * inv_n                                         # (1, C, 1)
    var = jnp.maximum(s2 * inv_n - mean * mean, 0.0)          # biased var (BN training)
    gb = gb_ref[...]                                          # (C, 2) f32
    gamma = gb[None, :, 0:1]                                  # (1, C, 1)
    beta = gb[None, :, 1:2]
    scale = gamma * lax.rsqrt(var + eps)
    shift = beta - mean * scale
    y = _activate(x * scale + shift, activation, slope)
    o_ref[...] = y.astype(o_ref.dtype)


# ----------------------- pass 1: per-(n, c) partial sums ---------------------
def _bn_stats_kernel(total_l, lane_block, need_mask, x_ref, sums_ref):
    """Accumulate per-channel [sum, sumsq] partials for one batch index."""
    @pl.when(pl.program_id(1) == 0)
    def _():
        sums_ref[...] = jnp.zeros_like(sums_ref)

    x = x_ref[...].astype(jnp.float32)                        # (C, lb)
    if need_mask:  # static: only traced when L % lb != 0
        lane = lax.broadcasted_iota(jnp.int32, x.shape, 1)
        valid = (pl.program_id(1) * lane_block + lane) < total_l
        x = jnp.where(valid, x, 0.0)
    sums_ref[:, 0:1] += jnp.sum(x, axis=1, keepdims=True)
    sums_ref[:, 1:2] += jnp.sum(x * x, axis=1, keepdims=True)


# ----------------------- pass 2: normalize + activation ----------------------
def _bn_apply_kernel(activation, slope, x_ref, ss_ref, o_ref):
    x = x_ref[...].astype(jnp.float32)                        # (C, lb)
    scale = ss_ref[:, 0:1]                                    # (C, 1) f32
    shift = ss_ref[:, 1:2]
    y = _activate(x * scale + shift, activation, slope)
    o_ref[...] = y.astype(o_ref.dtype)


# --------------------------------- wrapper -----------------------------------
def activated_batchnorm_forward(x_nchw, gamma, beta, *, eps=1e-5,
                                activation="relu", slope=0.01,
                                max_lane_block=None, force_two_pass=False):
    """Forward of _ActivatedBatchNorm (training-mode batch statistics)."""
    x = jnp.asarray(x_nchw)
    if x.dtype not in (jnp.float32, jnp.bfloat16, jnp.float16):
        x = x.astype(jnp.float32)
    N, C, H, W = x.shape
    L = H * W
    x3 = x.reshape(N, C, L)                 # free reshape of NCHW (no transpose)
    dtype = x.dtype
    itemsize = x.dtype.itemsize
    count = float(N * L)

    gb = jnp.stack([jnp.asarray(gamma, jnp.float32).reshape(C),
                    jnp.asarray(beta, jnp.float32).reshape(C)], axis=1)   # (C, 2)

    vmem_cap = _vmem_capacity_bytes()
    vmem_limit = min(64 * 1024 * 1024, vmem_cap // 2)   # 64 MiB on v5e/v6e, 32 MiB on v7x

    # ---------- fused single-pass path: whole tensor resident in VMEM ----------
    fused_bytes = N * _round_up(C, 8) * _round_up(L, 128) * (2 * itemsize + 8)
    if (not force_two_pass) and fused_bytes <= vmem_limit // 3:
        kernel = functools.partial(_bn_fused_kernel, count, float(eps),
                                   activation, float(slope))
        y3 = pl.pallas_call(
            kernel,
            out_shape=jax.ShapeDtypeStruct((N, C, L), dtype),
            grid=(1,),
            in_specs=[pl.BlockSpec((N, C, L), lambda i: (0, 0, 0)),
                      pl.BlockSpec((C, 2), lambda i: (0, 0))],
            out_specs=pl.BlockSpec((N, C, L), lambda i: (0, 0, 0)),
            compiler_params=pltpu.CompilerParams(
                dimension_semantics=("arbitrary",),
                vmem_limit_bytes=vmem_limit),
        )(x3, gb)
        return y3.reshape(N, C, H, W)

    # ---------- lane-tile size from the VMEM budget (pass 2 dominates) ----------
    c_pad = _round_up(C, 8)
    budget = (vmem_limit * 3) // 5            # headroom for double-buffered in+out
    lb_cap = (budget // (4 * c_pad * itemsize)) // 128 * 128
    lb_cap = max(128, lb_cap)
    if max_lane_block is not None:
        lb_cap = max(128, min(lb_cap, (max_lane_block // 128) * 128))
    lb = L if L <= lb_cap else lb_cap         # full lane extent or a 128-multiple
    nl = pl.cdiv(L, lb)
    need_mask = (L % lb) != 0

    # ---------- pass 1: per-(batch, channel) partial sums ------------------------
    stats_kernel = functools.partial(_bn_stats_kernel, L, lb, need_mask)
    sums = pl.pallas_call(
        stats_kernel,
        out_shape=jax.ShapeDtypeStruct((N, C, 2), jnp.float32),
        grid=(N, nl),
        in_specs=[pl.BlockSpec((None, C, lb), lambda n, l: (n, 0, l))],
        out_specs=pl.BlockSpec((None, C, 2), lambda n, l: (n, 0, 0)),
        compiler_params=pltpu.CompilerParams(
            dimension_semantics=("parallel", "arbitrary"),
            vmem_limit_bytes=vmem_limit),
    )(x3)

    # ---------- tiny epilogue on (C,) vectors: fold partials -> scale/shift ------
    tot = jnp.sum(sums, axis=0)                               # (C, 2)
    mean = tot[:, 0] / count
    var = jnp.maximum(tot[:, 1] / count - mean * mean, 0.0)   # biased var (BN training)
    scale = gb[:, 0] * lax.rsqrt(var + float(eps))
    shift = gb[:, 1] - mean * scale
    ss = jnp.stack([scale, shift], axis=1).astype(jnp.float32)   # (C, 2)

    # ---------- pass 2: normalize + activation, lane-dense store ----------------
    apply_kernel = functools.partial(_bn_apply_kernel, activation, float(slope))
    y3 = pl.pallas_call(
        apply_kernel,
        out_shape=jax.ShapeDtypeStruct((N, C, L), dtype),
        grid=(N, nl),
        in_specs=[pl.BlockSpec((None, C, lb), lambda n, l: (n, 0, l)),
                  pl.BlockSpec((C, 2), lambda n, l: (0, 0))],
        out_specs=pl.BlockSpec((None, C, lb), lambda n, l: (n, 0, l)),
        compiler_params=pltpu.CompilerParams(
            dimension_semantics=("parallel", "parallel"),
            vmem_limit_bytes=vmem_limit),
    )(x3, ss)

    return y3.reshape(N, C, H, W)


# ------------------------- pure numpy reference (PyTorch semantics) ----------
def ref_forward_np(x, gamma, beta, eps=1e-5, activation="relu", slope=0.01):
    x = np.asarray(x, np.float32)
    m = x.mean(axis=(0, 2, 3), keepdims=True)
    v = x.var(axis=(0, 2, 3), keepdims=True)                  # biased, like BN training
    y = (x - m) / np.sqrt(v + eps)
    y = y * np.asarray(gamma, np.float32).reshape(1, -1, 1, 1) \
        + np.asarray(beta, np.float32).reshape(1, -1, 1, 1)
    if activation == "relu":
        y = np.maximum(y, 0.0)
    elif activation == "leaky_relu":
        y = np.where(y >= 0.0, y, slope * y)
    elif activation == "elu":
        y = np.where(y >= 0.0, y, np.exp(y) - 1.0)
    return y.astype(np.float32)


if __name__ == "__main__":
    key = jax.random.PRNGKey(0)
    kx, kg, kb, kx2 = jax.random.split(key, 4)

    # _ActivatedBatchNorm(num_features=4), activation='relu' (default).
    N, C, H, W = 2, 4, 16, 16
    x = jax.random.normal(kx, (N, C, H, W), jnp.float32) * 2.0 + 0.5
    gamma = 1.0 + 0.1 * jax.random.normal(kg, (C,), jnp.float32)
    beta = 0.1 * jax.random.normal(kb, (C,), jnp.float32)

    # Path A: fused single-pass kernel (tensor fits in VMEM), f32, ReLU.
    out = jax.block_until_ready(
        activated_batchnorm_forward(x, gamma, beta, activation="relu"))
    ref = ref_forward_np(np.asarray(x), np.asarray(gamma), np.asarray(beta),
                         activation="relu")
    assert out.shape == (N, C, H, W), out.shape
    err = float(np.max(np.abs(np.asarray(out, np.float32) - ref)))
    assert err < 1e-3, f"fused path mismatch: max|diff|={err}"

    # Path B: forced two-pass streaming path with a ragged (masked) lane tile,
    # bf16 streaming dtype, leaky_relu.
    N2, C2, H2, W2 = 2, 4, 15, 15                  # L = 225, not a multiple of 128
    x2 = (jax.random.normal(kx2, (N2, C2, H2, W2), jnp.float32) * 1.5 - 0.3
          ).astype(jnp.bfloat16)
    out2 = jax.block_until_ready(
        activated_batchnorm_forward(x2, gamma, beta, activation="leaky_relu",
                                    force_two_pass=True, max_lane_block=128))
    ref2 = ref_forward_np(np.asarray(x2, np.float32), np.asarray(gamma),
                          np.asarray(beta), activation="leaky_relu")
    assert out2.shape == (N2, C2, H2, W2), out2.shape
    err2 = float(np.max(np.abs(np.asarray(out2, np.float32) - ref2)))
    assert err2 < 5e-2, f"two-pass path mismatch: max|diff|={err2}"

    print("KERNEL_OK")
</pallas_src>

<mosaic_0001>
module attributes {stable_mosaic.version = 11 : i64} {
  func.func @_bn_fused_kernel(%arg0: i32, %arg1: memref<2x4x256xf32, #tpu.memory_space<vmem>>, %arg2: memref<4x2xf32, #tpu.memory_space<vmem>>, %arg3: memref<2x4x256xf32, #tpu.memory_space<vmem>>) attributes {dimension_semantics = [#tpu.dimension_semantics<arbitrary>], iteration_bounds = array<i64: 1>, scalar_prefetch = 0 : i64, scratch_operands = 0 : i64, tpu.core_type = #tpu.core_type<tc>, window_params = [{pipeline_mode = #tpu.pipeline_mode<synchronous>, transform_indices = @transform_0, window_bounds = array<i64: 2, 4, 256>}, {pipeline_mode = #tpu.pipeline_mode<synchronous>, transform_indices = @transform_1, window_bounds = array<i64: 4, 2>}, {pipeline_mode = #tpu.pipeline_mode<synchronous>, transform_indices = @transform_2, window_bounds = array<i64: 2, 4, 256>}]} {
    %c0 = arith.constant 0 : index
    %c0_0 = arith.constant 0 : index
    %c0_1 = arith.constant 0 : index
    %0 = vector.load %arg1[%c0, %c0_0, %c0_1] : memref<2x4x256xf32, #tpu.memory_space<vmem>>, vector<2x4x256xf32>
    %cst = arith.constant dense<0.000000e+00> : vector<2x4xf32>
    %1 = vector.multi_reduction <add>, %0, %cst [2] : vector<2x4x256xf32> to vector<2x4xf32>
    %2 = vector.shape_cast %1 : vector<2x4xf32> to vector<2x4x1xf32>
    %cst_2 = arith.constant dense<0.000000e+00> : vector<4x1xf32>
    %3 = vector.multi_reduction <add>, %2, %cst_2 [0] : vector<2x4x1xf32> to vector<4x1xf32>
    %4 = vector.shape_cast %3 : vector<4x1xf32> to vector<1x4x1xf32>
    %5 = arith.mulf %0, %0 : vector<2x4x256xf32>
    %cst_3 = arith.constant dense<0.000000e+00> : vector<2x4xf32>
    %6 = vector.multi_reduction <add>, %5, %cst_3 [2] : vector<2x4x256xf32> to vector<2x4xf32>
    %7 = vector.shape_cast %6 : vector<2x4xf32> to vector<2x4x1xf32>
    %cst_4 = arith.constant dense<0.000000e+00> : vector<4x1xf32>
    %8 = vector.multi_reduction <add>, %7, %cst_4 [0] : vector<2x4x1xf32> to vector<4x1xf32>
    %9 = vector.shape_cast %8 : vector<4x1xf32> to vector<1x4x1xf32>
    %cst_5 = arith.constant 0.001953125 : f32
    %10 = vector.broadcast %cst_5 : f32 to vector<1x4x1xf32>
    %11 = arith.mulf %4, %10 : vector<1x4x1xf32>
    %cst_6 = arith.constant 0.001953125 : f32
    %12 = vector.broadcast %cst_6 : f32 to vector<1x4x1xf32>
    %13 = arith.mulf %9, %12 : vector<1x4x1xf32>
    %14 = arith.mulf %11, %11 : vector<1x4x1xf32>
    %15 = arith.subf %13, %14 : vector<1x4x1xf32>
    %cst_7 = arith.constant 0.000000e+00 : f32
    %16 = vector.broadcast %cst_7 : f32 to vector<1x4x1xf32>
    %17 = arith.maximumf %15, %16 : vector<1x4x1xf32>
    %c0_8 = arith.constant 0 : index
    %c0_9 = arith.constant 0 : index
    %18 = vector.load %arg2[%c0_8, %c0_9] : memref<4x2xf32, #tpu.memory_space<vmem>>, vector<4x2xf32>
    %19 = vector.extract_strided_slice %18 {offsets = [0, 0], sizes = [4, 1], strides = [1, 1]} : vector<4x2xf32> to vector<4x1xf32>
    %20 = vector.shape_cast %19 : vector<4x1xf32> to vector<1x4x1xf32>
    %21 = vector.extract_strided_slice %18 {offsets = [0, 1], sizes = [4, 1], strides = [1, 1]} : vector<4x2xf32> to vector<4x1xf32>
    %22 = vector.shape_cast %21 : vector<4x1xf32> to vector<1x4x1xf32>
    %cst_10 = arith.constant 9.99999974E-6 : f32
    %23 = vector.broadcast %cst_10 : f32 to vector<1x4x1xf32>
    %24 = arith.addf %17, %23 : vector<1x4x1xf32>
    %25 = math.rsqrt %24 : vector<1x4x1xf32>
    %26 = arith.mulf %20, %25 : vector<1x4x1xf32>
    %27 = arith.mulf %11, %26 : vector<1x4x1xf32>
    %28 = arith.subf %22, %27 : vector<1x4x1xf32>
    %29 = vector.broadcast %26 : vector<1x4x1xf32> to vector<2x4x256xf32>
    %30 = arith.mulf %0, %29 : vector<2x4x256xf32>
    %31 = vector.broadcast %28 : vector<1x4x1xf32> to vector<2x4x256xf32>
    %32 = arith.addf %30, %31 : vector<2x4x256xf32>
    %cst_11 = arith.constant 0.000000e+00 : f32
    %33 = vector.broadcast %cst_11 : f32 to vector<2x4x256xf32>
    %34 = arith.maximumf %32, %33 : vector<2x4x256xf32>
    %c0_12 = arith.constant 0 : index
    %c0_13 = arith.constant 0 : index
    %c0_14 = arith.constant 0 : index
    %35 = vector.load %arg3[%c0_12, %c0_13, %c0_14] : memref<2x4x256xf32, #tpu.memory_space<vmem>>, vector<2x4x256xf32>
    tpu.vector_store %arg3[%c0_12, %c0_13, %c0_14], %34 {strides = array<i32>} : memref<2x4x256xf32, #tpu.memory_space<vmem>>, vector<2x4x256xf32>,
    return
  }
  func.func @transform_0(%arg0: i32) -> (i32, i32, i32) {
    %c0_i32 = arith.constant 0 : i32
    %c0_i32_0 = arith.constant 0 : i32
    %c0_i32_1 = arith.constant 0 : i32
    %c0_i32_2 = arith.constant 0 : i32
    return %c0_i32, %c0_i32_0, %c0_i32_1 : i32, i32, i32
  }
  func.func @transform_1(%arg0: i32) -> (i32, i32) {
    %c0_i32 = arith.constant 0 : i32
    %c0_i32_0 = arith.constant 0 : i32
    %c0_i32_1 = arith.constant 0 : i32
    return %c0_i32, %c0_i32_0 : i32, i32
  }
  func.func @transform_2(%arg0: i32) -> (i32, i32, i32) {
    %c0_i32 = arith.constant 0 : i32
    %c0_i32_0 = arith.constant 0 : i32
    %c0_i32_1 = arith.constant 0 : i32
    %c0_i32_2 = arith.constant 0 : i32
    return %c0_i32, %c0_i32_0, %c0_i32_1 : i32, i32, i32
  }
}

</mosaic_0001>

<llo_original>
// kernel: tpu_custom_call.1
$region0: #{tpu_custom_call.1}
  #allocation0 [shape = 'u32[]', space=smem, size = 0x4, offset = 0x4, fixed_abs, tag = 'smem constant byte address 0x4 - core index']
  #allocation1 [shape = 'u32[144,128]{1,0:T(1,128)}', space=vmem, size = 0x12000, scoped, tag = 'internal scratch']
  %s0 = inlined_call_operand.hbm [shape: f32[2,4,256], index: 0, kind: input, shape index: {}]
  %s1 = inlined_call_operand.vmem [shape: f32[4,2], index: 1, kind: input, shape index: {}]
  %s2 = inlined_call_operand.hbm [shape: f32[2,4,256], index: 2, kind: output, shape index: {}]
  %s3 = sld [smem:[#allocation0]]
  $region22: #{tpu_custom_call.1} parent=0
    _
  %s5 = ssub.s32 1, %s3
  %s6 = scalar_select 0, %s5, %s3
  $region1: #{tpu_custom_call.1} parent=0
    #allocation2 [shape = 'u8[8192]{0}', space=vmem, size = 0x2000, scoped, tag = 'input window, operand 0, single buffered']
    #allocation3 [shape = 's32[1]{0}', space=sflag, size = 0x4, scoped, tag = 'scoped memory for tpu_custom_call.1']
    #allocation4 [shape = 's32[1]{0}', space=sflag, size = 0x4, scoped, tag = 'scoped memory for tpu_custom_call.1']
    #allocation5 [shape = 'u8[8192]{0}', space=vmem, size = 0x2000, scoped, tag = 'output window, operand 0, single buffered']
    %7 = vsyncpa [#allocation3], 0
    %8 = vsyncpa [#allocation4], 0
    // Predicated region
    $region2: #{tpu_custom_call.1} parent=1 // pred_check
      _
    $region3: #{tpu_custom_call.1} parent=1 // pred_check_branch
      %10 = sbr.rel (0) target = $region5
    $region4: #{tpu_custom_call.1} parent=1 // pred_region
      %s12 = ssub.s32 256, 256
      %13 = vsyncadd [#allocation3], %s12
      %s14 = sshll.u32 [#allocation2], 4
      %s15 = int_to_ptr.vmem [resolvable:$true] %s14
      %20 = dma.hbm_to_vmem [thread:$0]  %s0, 256, %s15, [#allocation3], 128, 128, 8
    $region5: #{tpu_custom_call.1} parent=1 // pred_fallthru
      _
    // Predicated region
    $region6: #{tpu_custom_call.1} parent=1 // pred_check
      _
    $region7: #{tpu_custom_call.1} parent=1 // pred_check_branch
      %22 = sbr.rel (0) target = $region9
    $region8: #{tpu_custom_call.1} parent=1 // pred_region
      _
    $region9: #{tpu_custom_call.1} parent=1 // pred_fallthru
      _
    // Predicated region
    $region10: #{tpu_custom_call.1} parent=1 // pred_check
      _
    $region11: #{tpu_custom_call.1} parent=1 // pred_check_branch
      %24 = sbr.rel (0) target = $region13
    $region12: #{tpu_custom_call.1} parent=1 // pred_region
      %25 = dma.done [#allocation3], 256
    $region13: #{tpu_custom_call.1} parent=1 // pred_fallthru
      _
    %v26 = vld [vmem:[#allocation2] sm:$0xff]
    %v27 = vld [vmem:[#allocation2 + $0x8] sm:$0xff]
    %v30 = vcombine.high %v26, %v26
    %v31 = vcombine.high %v27, %v27
    %vm34 = vcmask 1043456
    %v35 = vsel %vm34, %v26, 0.0
    %v36 = vsel %vm34, %v30, 0.0
    %v37 = vadd.f32 %v35, %v36
    %38 = vadd.xlane.f32.xlu0 %v37
    %v39 = vpop.xlane.xlu0 %38
    %v40 = vsel %vm34, %v27, 0.0
    %v41 = vsel %vm34, %v31, 0.0
    %v42 = vadd.f32 %v40, %v41
    %43 = vadd.xlane.f32.xlu0 %v42
    %v44 = vpop.xlane.xlu0 %43
    %v45 = vsel %vm34, %v39, 0.0
    %v46 = vsel %vm34, %v44, 0.0
    %v47 = vadd.f32 %v45, %v46
    %v48 = vmul.f32 %v26, %v26
    %v49 = vmul.f32 %v27, %v27
    %v52 = vcombine.high %v48, %v48
    %v53 = vcombine.high %v49, %v49
    %v56 = vsel %vm34, %v48, 0.0
    %v57 = vsel %vm34, %v52, 0.0
    %v58 = vadd.f32 %v56, %v57
    %59 = vadd.xlane.f32.xlu0 %v58
    %v60 = vpop.xlane.xlu0 %59
    %v61 = vsel %vm34, %v49, 0.0
    %v62 = vsel %vm34, %v53, 0.0
    %v63 = vadd.f32 %v61, %v62
    %64 = vadd.xlane.f32.xlu0 %v63
    %v65 = vpop.xlane.xlu0 %64
    %v66 = vsel %vm34, %v60, 0.0
    %v67 = vsel %vm34, %v65, 0.0
    %v68 = vadd.f32 %v66, %v67
    %v69 = vmul.f32 %v47, 0.001953125
    %v70 = vmul.f32 %v68, 0.001953125
    %v71 = vmul.f32 %v69, %v69
    %v72 = vsub.f32 %v70, %v71
    %v73 = vmax.f32 %v72, 0.0
    %v74 = vld [vmem:[%s1] sm:$0xf]
    %v75 = vadd.f32 %v73, 1e-05
    %v76 = vrsqrt.pop %v75
    %v77 = vmul.f32 %v74, %v76
    %v78 = vmul.f32 %v69, %v77
    %80 = vrot.lane.b32.xlu0 %v78, 1
    %v81 = vpop.permute.xlu0 %80
    %v83 = vsub.f32 %v74, %v81
    %85 = vset.pattern.permute.xlu0 0
    %86 = vperm.xlu0 %85, %v77
    %v87 = vpop.permute.xlu0 %86
    %v89 = vunpack.c.l.s4 839922192
    %v90 = vunpack.c.0.s8 %v89
    %v91 = vlaneseq
    %v92 = vshrl.u32 %v91, 7
    %v93 = vsub.s32 %v90, %v92
    %v94 = vrot.slane %v87, %v93
    %v96 = vmul.f32 %v26, %v94
    %v97 = vmul.f32 %v27, %v94
    %99 = vset.pattern.permute.xlu0 1
    %100 = vperm.xlu0 %99, %v83
    %v101 = vpop.permute.xlu0 %100
    %v103 = vunpack.c.l.s4 839922192
    %v104 = vunpack.c.0.s8 %v103
    %v105 = vlaneseq
    %v106 = vshrl.u32 %v105, 7
    %v107 = vsub.s32 %v104, %v106
    %v108 = vrot.slane %v101, %v107
    %v110 = vadd.f32 %v96, %v108
    %v111 = vadd.f32 %v97, %v108
    %v112 = vmax.f32 %v110, 0.0
    %v113 = vmax.f32 %v111, 0.0
    %114 = vst [vmem:[#allocation5] sm:$0xff] %v112
    %115 = vst [vmem:[#allocation5 + $0x8] sm:$0xff] %v113
    // Predicated region
    $region14: #{tpu_custom_call.1} parent=1 // pred_check
      _
    $region15: #{tpu_custom_call.1} parent=1 // pred_check_branch
      %117 = sbr.rel (0) target = $region17
    $region16: #{tpu_custom_call.1} parent=1 // pred_region
      %s119 = ssub.s32 256, 256
      %120 = vsyncadd [#allocation4], %s119
      %s121 = sshll.u32 [#allocation5], 4
      %s122 = int_to_ptr.vmem [resolvable:$true] %s121
      %127 = dma.vmem_to_hbm [thread:$0]  %s122, 256, %s2, [#allocation4], 128, 128, 8
    $region17: #{tpu_custom_call.1} parent=1 // pred_fallthru
      _
    // Predicated region
    $region18: #{tpu_custom_call.1} parent=1 // pred_check
      _
    $region19: #{tpu_custom_call.1} parent=1 // pred_check_branch
      %129 = sbr.rel (0) target = $region21
    $region20: #{tpu_custom_call.1} parent=1 // pred_region
      %130 = dma.done [#allocation4], 256
    $region21: #{tpu_custom_call.1} parent=1 // pred_fallthru
      _
    %131 = vsyncpa [#allocation3], 1
    %132 = vsyncpa [#allocation4], 1

</llo_original>
